<compile_context>
chip_gen: v7x
topology: tpu7x:2x2x1
jax: 0.10.0
libtpu: 0.0.40
codegen_flags: <defaults>
</compile_context>

<pallas_src>
import jax
import jax.numpy as jnp
from jax.experimental import pallas as pl
from jax.experimental.pallas import tpu as pltpu


def _split_linear_kernel(x_ref, w_ref, b_ref, o_ref, acc_ref):
    k = pl.program_id(1)  # reduction axis (last grid axis)

    @pl.when(k == 0)
    def _():
        # Seed accumulator with the broadcast bias instead of zeros: drops the
        # separate bias add + accumulator read-modify-write in the epilogue.
        acc_ref[...] = jnp.broadcast_to(
            b_ref[...].astype(jnp.float32), acc_ref.shape)

    # Canonical (M,K) @ (K,N) MXU matmul, f32 accumulation (matches torch f32 sum).
    acc_ref[...] += jnp.dot(x_ref[...], w_ref[...],
                            preferred_element_type=jnp.float32)

    @pl.when(k == pl.num_programs(1) - 1)
    def _():
        o_ref[...] = acc_ref[...].astype(o_ref.dtype)


def _round_up(a, m):
    return (a + m - 1) // m * m


def split_linear_in(x, weight, bias, n_split, *, tn=256, tk=512,
                    compute_dtype=None, vmem_limit_bytes=64 * 1024 * 1024):
    """SplitLinearIn.forward: x:[B,K], weight:[N,K], bias:[N] -> [B,N].

    n_split is only validated (module contract); tiling is hardware-driven.
    compute_dtype=jnp.bfloat16 feeds bf16 operands to the MXU (f32 accumulate)
    for v5e/v6e/v7x throughput; default keeps the input dtype (bit-faithful f32).
    """
    B, K = x.shape
    N, Kw = weight.shape
    assert K == Kw, "weight in_features mismatch"
    if K % n_split != 0:
        raise NotImplementedError("in_features must be divisible by n_split")

    if bias is None:
        bias = jnp.zeros((N,), dtype=x.dtype)

    # ---- (8,128)-aligned tiles, clipped to the (padded) problem size ----
    tn = min(tn, _round_up(N, 128))
    tk = min(tk, _round_up(K, 128))
    Bp = _round_up(B, 8)
    Np = _round_up(N, tn)
    Kp = _round_up(K, tk)

    # ---- one-time HBM-side layout prep: W -> (K, N) canonical MXU RHS ----
    wt = weight.T
    if (Kp, Np) != (K, N):
        wt = jnp.pad(wt, ((0, Kp - K), (0, Np - N)))
    xp = x if (Bp, Kp) == (B, K) else jnp.pad(x, ((0, Bp - B), (0, Kp - K)))
    b2 = bias.reshape(1, N)
    if Np != N:
        b2 = jnp.pad(b2, ((0, 0), (0, Np - N)))

    if compute_dtype is not None:
        xp = xp.astype(compute_dtype)
        wt = wt.astype(compute_dtype)

    grid = (Np // tn, Kp // tk)  # (parallel out-tiles, reduction last)

    out = pl.pallas_call(
        _split_linear_kernel,
        out_shape=jax.ShapeDtypeStruct((Bp, Np), x.dtype),
        grid_spec=pltpu.PrefetchScalarGridSpec(
            num_scalar_prefetch=0,
            grid=grid,
            in_specs=[
                pl.BlockSpec((Bp, tk), lambda j, k: (0, k)),   # x K-chunk
                pl.BlockSpec((tk, tn), lambda j, k: (k, j)),   # W.T tile (K,N)
                pl.BlockSpec((1, tn), lambda j, k: (0, j)),    # bias tile
            ],
            out_specs=pl.BlockSpec((Bp, tn), lambda j, k: (0, j)),
            scratch_shapes=[pltpu.VMEM((Bp, tn), jnp.float32)],
        ),
        compiler_params=pltpu.CompilerParams(
            dimension_semantics=("parallel", "arbitrary"),
            vmem_limit_bytes=vmem_limit_bytes,
        ),
    )(xp, wt, b2)

    if (Bp, Np) != (B, N):
        out = out[:B, :N]
    return out


if __name__ == "__main__":
    # Small shapes consistent with the module; tiles chosen small (128) so the
    # test exercises both the parallel out-feature axis and a multi-step
    # reduction. Production defaults are tn=256 / tk=512.
    batch = 8
    in_features = 512
    out_features = 256
    n_split = 2

    key = jax.random.PRNGKey(0)
    kx, kw, kb = jax.random.split(key, 3)

    x = jax.random.normal(kx, (batch, in_features), dtype=jnp.float32)
    weight = jax.random.normal(kw, (out_features, in_features), dtype=jnp.float32) * 0.05
    bias = jax.random.normal(kb, (out_features,), dtype=jnp.float32) * 0.1

    y = split_linear_in(x, weight, bias, n_split, tn=128, tk=128)
    y = jax.block_until_ready(y)

    # Reference: plain linear (identical math to the split-and-sum module).
    y_ref = x @ weight.T + bias
    assert y.shape == (batch, out_features)
    assert jnp.allclose(y, y_ref, atol=1e-4, rtol=1e-4), "mismatch vs reference"

    print("KERNEL_OK")
</pallas_src>

<mosaic_0001>
module attributes {stable_mosaic.version = 11 : i64} {
  func.func @_split_linear_kernel(%arg0: i32, %arg1: i32, %arg2: memref<8x128xf32, #tpu.memory_space<vmem>>, %arg3: memref<128x128xf32, #tpu.memory_space<vmem>>, %arg4: memref<1x128xf32, #tpu.memory_space<vmem>>, %arg5: memref<8x128xf32, #tpu.memory_space<vmem>>, %arg6: memref<8x128xf32, #tpu.memory_space<vmem>>) attributes {dimension_semantics = [#tpu.dimension_semantics<parallel>, #tpu.dimension_semantics<arbitrary>], iteration_bounds = array<i64: 2, 4>, scalar_prefetch = 0 : i64, scratch_operands = 1 : i64, tpu.core_type = #tpu.core_type<tc>, window_params = [{transform_indices = @transform_0, window_bounds = array<i64: 8, 128>}, {transform_indices = @transform_1, window_bounds = array<i64: 128, 128>}, {transform_indices = @transform_2, window_bounds = array<i64: 1, 128>}, {transform_indices = @transform_3, window_bounds = array<i64: 8, 128>}]} {
    %c0_i32 = arith.constant 0 : i32
    %0 = arith.cmpi eq, %arg1, %c0_i32 : i32
    %1 = arith.extui %0 : i1 to i32
    %c0_i32_0 = arith.constant 0 : i32
    %2 = arith.cmpi ne, %1, %c0_i32_0 : i32
    scf.if %2 {
      %c0_9 = arith.constant 0 : index
      %c0_10 = arith.constant 0 : index
      %12 = vector.load %arg4[%c0_9, %c0_10] : memref<1x128xf32, #tpu.memory_space<vmem>>, vector<1x128xf32>
      %13 = vector.shape_cast %12 : vector<1x128xf32> to vector<1x128xf32>
      %14 = vector.broadcast %13 : vector<1x128xf32> to vector<8x128xf32>
      %c0_11 = arith.constant 0 : index
      %c0_12 = arith.constant 0 : index
      %15 = vector.load %arg6[%c0_11, %c0_12] : memref<8x128xf32, #tpu.memory_space<vmem>>, vector<8x128xf32>
      tpu.vector_store %arg6[%c0_11, %c0_12], %14 {strides = array<i32>} : memref<8x128xf32, #tpu.memory_space<vmem>>, vector<8x128xf32>,
    } else {
    }
    %c0 = arith.constant 0 : index
    %c0_1 = arith.constant 0 : index
    %3 = vector.load %arg6[%c0, %c0_1] : memref<8x128xf32, #tpu.memory_space<vmem>>, vector<8x128xf32>
    %c0_2 = arith.constant 0 : index
    %c0_3 = arith.constant 0 : index
    %4 = vector.load %arg2[%c0_2, %c0_3] : memref<8x128xf32, #tpu.memory_space<vmem>>, vector<8x128xf32>
    %c0_4 = arith.constant 0 : index
    %c0_5 = arith.constant 0 : index
    %5 = vector.load %arg3[%c0_4, %c0_5] : memref<128x128xf32, #tpu.memory_space<vmem>>, vector<128x128xf32>
    %cst = arith.constant dense<0.000000e+00> : vector<8x128xf32>
    %6 = tpu.matmul %4, %5, %cst {dimension_numbers = #tpu.dot_dimension_numbers<[1], [0], [0], [1], [0, 0, 1, 1], [], []>} : vector<8x128xf32>, vector<128x128xf32>, vector<8x128xf32> -> vector<8x128xf32>
    %7 = arith.addf %3, %6 : vector<8x128xf32>
    %c0_6 = arith.constant 0 : index
    %c0_7 = arith.constant 0 : index
    %8 = vector.load %arg6[%c0_6, %c0_7] : memref<8x128xf32, #tpu.memory_space<vmem>>, vector<8x128xf32>
    tpu.vector_store %arg6[%c0_6, %c0_7], %7 {strides = array<i32>} : memref<8x128xf32, #tpu.memory_space<vmem>>, vector<8x128xf32>,
    %c3_i32 = arith.constant 3 : i32
    %9 = arith.cmpi eq, %arg1, %c3_i32 : i32
    %10 = arith.extui %9 : i1 to i32
    %c0_i32_8 = arith.constant 0 : i32
    %11 = arith.cmpi ne, %10, %c0_i32_8 : i32
    scf.if %11 {
      %c0_9 = arith.constant 0 : index
      %c0_10 = arith.constant 0 : index
      %12 = vector.load %arg6[%c0_9, %c0_10] : memref<8x128xf32, #tpu.memory_space<vmem>>, vector<8x128xf32>
      %c0_11 = arith.constant 0 : index
      %c0_12 = arith.constant 0 : index
      %13 = vector.load %arg5[%c0_11, %c0_12] : memref<8x128xf32, #tpu.memory_space<vmem>>, vector<8x128xf32>
      tpu.vector_store %arg5[%c0_11, %c0_12], %12 {strides = array<i32>} : memref<8x128xf32, #tpu.memory_space<vmem>>, vector<8x128xf32>,
    } else {
    }
    return
  }
  func.func @transform_0(%arg0: i32, %arg1: i32) -> (i32, i32) {
    %c0_i32 = arith.constant 0 : i32
    %c0_i32_0 = arith.constant 0 : i32
    return %c0_i32, %arg1 : i32, i32
  }
  func.func @transform_1(%arg0: i32, %arg1: i32) -> (i32, i32) {
    %c0_i32 = arith.constant 0 : i32
    return %arg1, %arg0 : i32, i32
  }
  func.func @transform_2(%arg0: i32, %arg1: i32) -> (i32, i32) {
    %c0_i32 = arith.constant 0 : i32
    %c0_i32_0 = arith.constant 0 : i32
    return %c0_i32, %arg0 : i32, i32
  }
  func.func @transform_3(%arg0: i32, %arg1: i32) -> (i32, i32) {
    %c0_i32 = arith.constant 0 : i32
    %c0_i32_0 = arith.constant 0 : i32
    return %c0_i32, %arg0 : i32, i32
  }
}

</mosaic_0001>

<llo_original>
// kernel: tpu_custom_call.1
$region0: #{tpu_custom_call.1}
  #allocation0 [shape = 'u32[]', space=smem, size = 0x4, offset = 0x4, fixed_abs, tag = 'smem constant byte address 0x4 - core index']
  #allocation1 [shape = 'u32[144,128]{1,0:T(1,128)}', space=vmem, size = 0x12000, scoped, tag = 'internal scratch']
  #allocation2 [shape = 'f32[8,128]{1,0:T(8,128)}', space=vmem, size = 0x1000, scoped, tag = 'scratch operand']
  %s0 = inlined_call_operand.hbm [shape: f32[8,512], index: 0, kind: input, shape index: {}]
  %s1 = inlined_call_operand.hbm [shape: f32[512,256], index: 1, kind: input, shape index: {}]
  %s2 = inlined_call_operand.hbm [shape: f32[1,256], index: 2, kind: input, shape index: {}]
  %s3 = inlined_call_operand.hbm [shape: f32[8,256], index: 3, kind: output, shape index: {}]
  %s4 = sld [smem:[#allocation0]]
  $region65: #{tpu_custom_call.1} parent=0
    _
  %s6 = ssub.s32 1, %s4
  %s7 = scalar_select 0, %s6, %s4
  $region1: #{tpu_custom_call.1} parent=0
    #allocation3 [shape = 'u8[8192]{0}', space=vmem, size = 0x2000, scoped, tag = 'input window, operand 0']
    #allocation4 [shape = 's32[2]{0}', space=sflag, size = 0x8, scoped, tag = 'scoped memory for tpu_custom_call.1']
    #allocation5 [shape = 's32[2]{0}', space=sflag, size = 0x8, scoped, tag = 'scoped memory for tpu_custom_call.1']
    #allocation6 [shape = 'u8[131072]{0}', space=vmem, size = 0x20000, scoped, tag = 'input window, operand 1']
    #allocation7 [shape = 's32[2]{0}', space=sflag, size = 0x8, scoped, tag = 'scoped memory for tpu_custom_call.1']
    #allocation8 [shape = 'u8[1024]{0}', space=vmem, size = 0x400, scoped, tag = 'input window, operand 2']
    #allocation9 [shape = 'u8[8192]{0}', space=vmem, size = 0x2000, scoped, tag = 'output window, operand 0']
    %8 = vsyncpa [#allocation4], 0
    %s9 = scalar_lea.sflag [#allocation4], 1
    %10 = vsyncpa %s9, 0
    %11 = vsyncpa [#allocation7], 0
    %s12 = scalar_lea.sflag [#allocation7], 1
    %13 = vsyncpa %s12, 0
    %14 = vsyncpa [#allocation5], 0
    %s15 = scalar_lea.sflag [#allocation5], 1
    %16 = vsyncpa %s15, 0
    loop: start=0, step=1, limit=10
    $region2: #{tpu_custom_call.1} parent=1 // loop_pre_header
      _
    $region3: #{tpu_custom_call.1} parent=1 // loop_header
      %s18 = sphi 0, %s22
      %p19 = scmp.ge.s32.totalorder %s18, 10
      %s25 = sphi 0, %s37
      %s26 = sphi 0, %s33
      %s27 = sphi 0, %s25
      %s28 = sphi 0, %s26
      %s29 = sphi 0, %s27
      %s30 = sphi 0, %s28
      %s40 = sphi 0, %s42
      %s43 = sphi 0, %s40
      %s44 = sphi 0, %s43
      %s60 = sphi 0, %s44
      %s68 = sphi 0, %s70
      %s71 = sphi 0, %s68
      %s72 = sphi 0, %s71
      %s88 = sphi 0, %s72
      %s94 = sphi 0, %s96
      %s97 = sphi 0, %s94
      %s98 = sphi 0, %s97
      %s114 = sphi 0, %s98
      %s120 = sphi 0, %s122
      %s123 = sphi 0, %s120
      %s124 = sphi 0, %s123
      %s140 = sphi 0, %s124
    $region4: #{tpu_custom_call.1} parent=1 // loop_header_branch
      %21 = sbr.rel (%p19) target = $region8
    $region5: #{tpu_custom_call.1} parent=1 // loop_body
      %s23 = ssub.s32 %s18, 1
      %s24 = ssub.s32 %s18, 2
      %s31 = sadd.s32 1, %s26
      %p32 = scmp.ge.s32.totalorder %s31, 4
      %s33 = scalar_select %p32, 0, %s31
      %s34 = sadd.s32 1, %s25
      %s35 = scalar_select %p32, %s34, %s25
      %p36 = scmp.ge.s32.totalorder %s35, 2
      %s37 = scalar_select %p36, 0, %s35
      %s38 = ssub.s32 %s26, %s33
      %p39 = scmp.eq.s32.totalorder %s38, 0
      %s41 = sadd.s32 %s40, 1
      %s42 = scalar_select %p39, %s40, %s41
      %p45 = pneg %p39
      %p46 = scmp.eq.s32.totalorder %s18, 7
      %p47 = por %p45, %p46
      %p48 = scmp.ne.s32.totalorder %s40, %s43
      %p49 = scmp.eq.s32.totalorder %s18, 0
      %p50 = por %p48, %p49
      %p51 = scmp.ne.s32.totalorder %s40, %s43
      %p52 = scmp.eq.s32.totalorder %s23, 7
      %p53 = por %p51, %p52
      %p54 = scmp.ne.s32.totalorder %s43, %s44
      %p55 = scmp.eq.s32.totalorder %s23, 0
      %p56 = por %p54, %p55
      %p57 = scmp.ne.s32.totalorder %s43, %s44
      %p58 = scmp.eq.s32.totalorder %s24, 7
      %p59 = por %p57, %p58
      %p61 = scmp.ne.s32.totalorder %s44, %s60
      %p62 = scmp.eq.s32.totalorder %s24, 0
      %p63 = por %p61, %p62
      %s64 = ssub.s32 %s26, %s33
      %s65 = ssub.s32 %s25, %s37
      %s66 = sor.u32 %s64, %s65
      %p67 = scmp.eq.s32.totalorder %s66, 0
      %s69 = sadd.s32 %s68, 1
      %s70 = scalar_select %p67, %s68, %s69
      %p73 = pneg %p67
      %p74 = scmp.eq.s32.totalorder %s18, 7
      %p75 = por %p73, %p74
      %p76 = scmp.ne.s32.totalorder %s68, %s71
      %p77 = scmp.eq.s32.totalorder %s18, 0
      %p78 = por %p76, %p77
      %p79 = scmp.ne.s32.totalorder %s68, %s71
      %p80 = scmp.eq.s32.totalorder %s23, 7
      %p81 = por %p79, %p80
      %p82 = scmp.ne.s32.totalorder %s71, %s72
      %p83 = scmp.eq.s32.totalorder %s23, 0
      %p84 = por %p82, %p83
      %p85 = scmp.ne.s32.totalorder %s71, %s72
      %p86 = scmp.eq.s32.totalorder %s24, 7
      %p87 = por %p85, %p86
      %p89 = scmp.ne.s32.totalorder %s72, %s88
      %p90 = scmp.eq.s32.totalorder %s24, 0
      %p91 = por %p89, %p90
      %s92 = ssub.s32 %s25, %s37
      %p93 = scmp.eq.s32.totalorder %s92, 0
      %s95 = sadd.s32 %s94, 1
      %s96 = scalar_select %p93, %s94, %s95
      %p99 = pneg %p93
      %p100 = scmp.eq.s32.totalorder %s18, 7
      %p101 = por %p99, %p100
      %p102 = scmp.ne.s32.totalorder %s94, %s97
      %p103 = scmp.eq.s32.totalorder %s18, 0
      %p104 = por %p102, %p103
      %p105 = scmp.ne.s32.totalorder %s94, %s97
      %p106 = scmp.eq.s32.totalorder %s23, 7
      %p107 = por %p105, %p106
      %p108 = scmp.ne.s32.totalorder %s97, %s98
      %p109 = scmp.eq.s32.totalorder %s23, 0
      %p110 = por %p108, %p109
      %p111 = scmp.ne.s32.totalorder %s97, %s98
      %p112 = scmp.eq.s32.totalorder %s24, 7
      %p113 = por %p111, %p112
      %p115 = scmp.ne.s32.totalorder %s98, %s114
      %p116 = scmp.eq.s32.totalorder %s24, 0
      %p117 = por %p115, %p116
      %s118 = ssub.s32 %s25, %s37
      %p119 = scmp.eq.s32.totalorder %s118, 0
      %s121 = sadd.s32 %s120, 1
      %s122 = scalar_select %p119, %s120, %s121
      %p125 = pneg %p119
      %p126 = scmp.eq.s32.totalorder %s18, 7
      %p127 = por %p125, %p126
      %p128 = scmp.ne.s32.totalorder %s120, %s123
      %p129 = scmp.eq.s32.totalorder %s18, 0
      %p130 = por %p128, %p129
      %p131 = scmp.ne.s32.totalorder %s120, %s123
      %p132 = scmp.eq.s32.totalorder %s23, 7
      %p133 = por %p131, %p132
      %p134 = scmp.ne.s32.totalorder %s123, %s124
      %p135 = scmp.eq.s32.totalorder %s23, 0
      %p136 = por %p134, %p135
      %p137 = scmp.ne.s32.totalorder %s123, %s124
      %p138 = scmp.eq.s32.totalorder %s24, 7
      %p139 = por %p137, %p138
      %p141 = scmp.ne.s32.totalorder %s124, %s140
      %p142 = scmp.eq.s32.totalorder %s24, 0
      %p143 = por %p141, %p142
      %p144 = scmp.le.s32.totalorder 1, %s18
      %p145 = scmp.lt.s32.totalorder %s18, 9
      %p146 = pnand %p144, %p145
      %p147 = pneg %p146
      // Predicated region
      $region9: #{tpu_custom_call.1} parent=5 // pred_check
        _
      $region10: #{tpu_custom_call.1} parent=5 // pred_check_branch
        %149 = sbr.rel (%p146) target = $region12
      $region11: #{tpu_custom_call.1} parent=5 // pred_region
        %s150 = ssub.s32 %s18, 1
      $region12: #{tpu_custom_call.1} parent=5 // pred_fallthru
        _
      %p151 = scmp.lt.s32.totalorder %s18, 8
      // Predicated region
      $region13: #{tpu_custom_call.1} parent=5 // pred_check
        %p152 = pneg %p151
      $region14: #{tpu_custom_call.1} parent=5 // pred_check_branch
        %154 = sbr.rel (%p152) target = $region16
      $region15: #{tpu_custom_call.1} parent=5 // pred_region
        // Predicated region
        $region17: #{tpu_custom_call.1} parent=15 // pred_check
          %p155 = pneg %p50
        $region18: #{tpu_custom_call.1} parent=15 // pred_check_branch
          %157 = sbr.rel (%p155) target = $region20
        $region19: #{tpu_custom_call.1} parent=15 // pred_region
          %s158 = sand.u32 %s40, 1
          %s159 = scalar_lea.sflag [#allocation4], %s158
          %s160 = sand.u32 %s40, 1
          %s161 = smul.addr %s160, 8
          %s162 = scalar_lea.vmem [#allocation3], %s161
          %s164 = ssub.s32 128, 128
          %165 = vsyncadd %s159, %s164
          %s166 = smul.addr %s26, 128
          %s167 = scalar_lea.hbm %s0, %s166
          %s169 = sshll.u32 %s162, 4
          %s170 = int_to_ptr.vmem [resolvable:$true] %s169
          %172 = dma.hbm_to_vmem [thread:$0]  %s167, 128, %s170, %s159
        $region20: #{tpu_custom_call.1} parent=15 // pred_fallthru
          _
        // Predicated region
        $region21: #{tpu_custom_call.1} parent=15 // pred_check
          %p173 = pneg %p78
        $region22: #{tpu_custom_call.1} parent=15 // pred_check_branch
          %175 = sbr.rel (%p173) target = $region24
        $region23: #{tpu_custom_call.1} parent=15 // pred_region
          %s176 = sand.u32 %s18, 1
          %s177 = scalar_lea.sflag [#allocation7], %s176
          %s178 = sand.u32 %s68, 1
          %s179 = smul.addr %s178, 128
          %s180 = scalar_lea.vmem [#allocation6], %s179
          %s181 = smul.u32 16, %s26
          %s183 = ssub.s32 2048, 2048
          %184 = vsyncadd %s177, %s183
          %s185 = smul.addr %s181, 2
          %s186 = sadd.s32 %s25, %s185
          %s187 = smul.addr %s186, 128
          %s188 = scalar_lea.hbm %s1, %s187
          %s189 = sshll.u32 %s180, 4
          %s190 = int_to_ptr.vmem [resolvable:$true] %s189
          %195 = dma.hbm_to_vmem [thread:$0]  %s188, 2048, %s190, %s177, 256, 128, 8
        $region24: #{tpu_custom_call.1} parent=15 // pred_fallthru
          _
        // Predicated region
        $region25: #{tpu_custom_call.1} parent=15 // pred_check
          %p196 = pneg %p104
        $region26: #{tpu_custom_call.1} parent=15 // pred_check_branch
          %198 = sbr.rel (%p196) target = $region28
        $region27: #{tpu_custom_call.1} parent=15 // pred_region
          %s199 = sand.u32 %s18, 1
          %s200 = scalar_lea.sflag [#allocation7], %s199
          %s201 = sand.u32 %s94, 1
          %s202 = scalar_lea.vmem [#allocation8], %s201
          %s204 = ssub.s32 16, 16
          %205 = vsyncadd %s200, %s204
          %s206 = smul.addr %s25, 16
          %s207 = scalar_lea.hbm %s2, %s206
          %s209 = sshll.u32 %s202, 4
          %s210 = int_to_ptr.vmem [resolvable:$true] %s209
          %212 = dma.hbm_to_vmem [thread:$0]  %s207, 16, %s210, %s200
        $region28: #{tpu_custom_call.1} parent=15 // pred_fallthru
          _
      $region16: #{tpu_custom_call.1} parent=5 // pred_fallthru
        _
      %p213 = scmp.le.s32.totalorder 1, %s18
      %p214 = scmp.lt.s32.totalorder %s18, 9
      %p215 = pnand %p213, %p214
      %p216 = pneg %p215
      // Predicated region
      $region29: #{tpu_custom_call.1} parent=5 // pred_check
        _
      $region30: #{tpu_custom_call.1} parent=5 // pred_check_branch
        %218 = sbr.rel (%p215) target = $region32
      $region31: #{tpu_custom_call.1} parent=5 // pred_region
        %s219 = ssub.s32 %s18, 1
        %s220 = sand.u32 %s43, 1
        %s221 = scalar_lea.sflag [#allocation4], %s220
        %s222 = sand.u32 %s43, 1
        %s223 = smul.addr %s222, 8
        %s224 = scalar_lea.vmem [#allocation3], %s223
        // Predicated region
        $region33: #{tpu_custom_call.1} parent=31 // pred_check
          %p225 = pneg %p56
        $region34: #{tpu_custom_call.1} parent=31 // pred_check_branch
          %227 = sbr.rel (%p225) target = $region36
        $region35: #{tpu_custom_call.1} parent=31 // pred_region
          %228 = dma.done %s221, 128
        $region36: #{tpu_custom_call.1} parent=31 // pred_fallthru
          _
        %s229 = sand.u32 %s23, 1
        %s230 = scalar_lea.sflag [#allocation7], %s229
        %s231 = sand.u32 %s71, 1
        %s232 = smul.addr %s231, 128
        %s233 = scalar_lea.vmem [#allocation6], %s232
        // Predicated region
        $region37: #{tpu_custom_call.1} parent=31 // pred_check
          %p234 = pneg %p84
        $region38: #{tpu_custom_call.1} parent=31 // pred_check_branch
          %236 = sbr.rel (%p234) target = $region40
        $region39: #{tpu_custom_call.1} parent=31 // pred_region
          %237 = dma.done %s230, 2048
        $region40: #{tpu_custom_call.1} parent=31 // pred_fallthru
          _
        %s238 = sand.u32 %s23, 1
        %s239 = scalar_lea.sflag [#allocation7], %s238
        %s240 = sand.u32 %s97, 1
        %s241 = scalar_lea.vmem [#allocation8], %s240
        // Predicated region
        $region41: #{tpu_custom_call.1} parent=31 // pred_check
          %p242 = pneg %p110
        $region42: #{tpu_custom_call.1} parent=31 // pred_check_branch
          %244 = sbr.rel (%p242) target = $region44
        $region43: #{tpu_custom_call.1} parent=31 // pred_region
          %245 = dma.done %s239, 16
        $region44: #{tpu_custom_call.1} parent=31 // pred_fallthru
          _
        %s246 = sand.u32 %s43, 1
        %s247 = scalar_lea.sflag [#allocation4], %s246
        %s248 = sand.u32 %s43, 1
        %s249 = smul.addr %s248, 8
        %s250 = scalar_lea.vmem [#allocation3], %s249
        %p251 = pneg %p56
        %p252 = pneg %p53
        %s253 = sand.u32 %s23, 1
        %s254 = scalar_lea.sflag [#allocation7], %s253
        %s255 = sand.u32 %s71, 1
        %s256 = smul.addr %s255, 128
        %s257 = scalar_lea.vmem [#allocation6], %s256
        %p258 = pneg %p84
        %p259 = pneg %p81
        %s260 = sand.u32 %s23, 1
        %s261 = scalar_lea.sflag [#allocation7], %s260
        %s262 = sand.u32 %s97, 1
        %s263 = scalar_lea.vmem [#allocation8], %s262
        %p264 = pneg %p110
        %p265 = pneg %p107
        %p266 = pneg %p136
        %p267 = pneg %p133
        %s268 = sand.u32 %s123, 1
        %s269 = scalar_lea.sflag [#allocation5], %s268
        %s270 = sand.u32 %s123, 1
        %s271 = smul.addr %s270, 8
        %s272 = scalar_lea.vmem [#allocation9], %s271
        %s273 = smul.u32 16, %s28
        %p274 = scmp.eq.s32.totalorder %s28, 0
        // Predicated region
        $region45: #{tpu_custom_call.1} parent=31 // pred_check
          %p275 = pneg %p274
        $region46: #{tpu_custom_call.1} parent=31 // pred_check_branch
          %277 = sbr.rel (%p275) target = $region48
        $region47: #{tpu_custom_call.1} parent=31 // pred_region
          %v278 = vld [vmem:[%s241] sm:$0x1]
          %v280 = vlaneseq
          %v281 = vshrl.u32 %v280, 7
          %v282 = vsub.s32 0, %v281
          %v283 = vrot.slane %v278, %v282
          %285 = vst [vmem:[#allocation2] sm:$0xff] %v283
        $region48: #{tpu_custom_call.1} parent=31 // pred_fallthru
          _
        %v286 = vld [vmem:[#allocation2] sm:$0xff]
        %v287 = vld [vmem:[%s224] sm:$0xff]
        %v288 = vld [vmem:[%s233] sm:$0xff]
        %v289 = vld [vmem:[%s233 + $0x8] sm:$0xff]
        %v290 = vld [vmem:[%s233 + $0x10] sm:$0xff]
        %v291 = vld [vmem:[%s233 + $0x18] sm:$0xff]
        %v292 = vld [vmem:[%s233 + $0x20] sm:$0xff]
        %v293 = vld [vmem:[%s233 + $0x28] sm:$0xff]
        %v294 = vld [vmem:[%s233 + $0x30] sm:$0xff]
        %v295 = vld [vmem:[%s233 + $0x38] sm:$0xff]
        %v296 = vld [vmem:[%s233 + $0x40] sm:$0xff]
        %v297 = vld [vmem:[%s233 + $0x48] sm:$0xff]
        %v298 = vld [vmem:[%s233 + $0x50] sm:$0xff]
        %v299 = vld [vmem:[%s233 + $0x58] sm:$0xff]
        %v300 = vld [vmem:[%s233 + $0x60] sm:$0xff]
        %v301 = vld [vmem:[%s233 + $0x68] sm:$0xff]
        %v302 = vld [vmem:[%s233 + $0x70] sm:$0xff]
        %v303 = vld [vmem:[%s233 + $0x78] sm:$0xff]
        %304 = vmatprep.subr.mxu0 0.0
        %305 = vmatpush1.msra.mxu0 %v288
        %306 = vmatprep.subr.mxu0 0.0
        %307 = vmatpush1.msra.mxu0 %v289
        %308 = vmatprep.subr.mxu0 0.0
        %309 = vmatpush1.msra.mxu0 %v290
        %310 = vmatprep.subr.mxu0 0.0
        %311 = vmatpush1.msra.mxu0 %v291
        %312 = vmatprep.subr.mxu0 0.0
        %313 = vmatpush1.msra.mxu0 %v292
        %314 = vmatprep.subr.mxu0 0.0
        %315 = vmatpush1.msra.mxu0 %v293
        %316 = vmatprep.subr.mxu0 0.0
        %317 = vmatpush1.msra.mxu0 %v294
        %318 = vmatprep.subr.mxu0 0.0
        %319 = vmatpush1.msra.mxu0 %v295
        %320 = vmatprep.subr.mxu0 0.0
        %321 = vmatpush1.msra.mxu0 %v296
        %322 = vmatprep.subr.mxu0 0.0
        %323 = vmatpush1.msra.mxu0 %v297
        %324 = vmatprep.subr.mxu0 0.0
        %325 = vmatpush1.msra.mxu0 %v298
        %326 = vmatprep.subr.mxu0 0.0
        %327 = vmatpush1.msra.mxu0 %v299
        %328 = vmatprep.subr.mxu0 0.0
        %329 = vmatpush1.msra.mxu0 %v300
        %330 = vmatprep.subr.mxu0 0.0
        %331 = vmatpush1.msra.mxu0 %v301
        %332 = vmatprep.subr.mxu0 0.0
        %333 = vmatpush1.msra.mxu0 %v302
        %334 = vmatprep.subr.mxu0 0.0
        %335 = vmatpush1.msra.mxu0 %v303
        %336 = vmatprep.subr.mxu0 0.0
        %337 = vmatpush1.msra.mxu0 0.0
        %338 = vmatprep.subr.mxu0 0.0
        %339 = vmatpush1.msra.mxu0 0.0
        %340 = vmatprep.subr.mxu0 0.0
        %341 = vmatpush1.msra.mxu0 0.0
        %342 = vmatprep.subr.mxu0 0.0
        %343 = vmatpush1.msra.mxu0 0.0
        %344 = vmatprep.subr.mxu0 0.0
        %345 = vmatpush1.msra.mxu0 0.0
        %346 = vmatprep.subr.mxu0 0.0
        %347 = vmatpush1.msra.mxu0 0.0
        %348 = vmatprep.subr.mxu0 0.0
        %349 = vmatpush1.msra.mxu0 0.0
        %350 = vmatprep.subr.mxu0 0.0
        %351 = vmatpush1.msra.mxu0 0.0
        %352 = vmatprep.subr.mxu0 0.0
        %353 = vmatpush1.msra.mxu0 0.0
        %354 = vmatprep.subr.mxu0 0.0
        %355 = vmatpush1.msra.mxu0 0.0
        %356 = vmatprep.subr.mxu0 0.0
        %357 = vmatpush1.msra.mxu0 0.0
        %358 = vmatprep.subr.mxu0 0.0
        %359 = vmatpush1.msra.mxu0 0.0
        %360 = vmatprep.subr.mxu0 0.0
        %361 = vmatpush1.msra.mxu0 0.0
        %362 = vmatprep.subr.mxu0 0.0
        %363 = vmatpush1.msra.mxu0 0.0
        %364 = vmatprep.subr.mxu0 0.0
        %365 = vmatpush1.msra.mxu0 0.0
        %366 = vmatprep.subr.mxu0 0.0
        %367 = vmatpush1.msra.mxu0 0.0
        %368 = vmatprep.mubr.f32.mxu0 0.0
        %369 = vmatmul.mubr.f32.gmra.mrb[0].mxu0 %v287
        %v370 = vpop.f32.mrb[0].mxu0
        %v371 = vadd.f32 0.0, %v370
        %v372 = vpop.f32.mrb[0].mxu0
        %373 = vdwg.mxu0
        %v374 = vadd.f32 %v286, %v371
        %375 = vst [vmem:[#allocation2] sm:$0xff] %v374
        %p376 = scmp.eq.s32.totalorder %s28, 3
        // Predicated region
        $region49: #{tpu_custom_call.1} parent=31 // pred_check
          %p377 = pneg %p376
        $region50: #{tpu_custom_call.1} parent=31 // pred_check_branch
          %379 = sbr.rel (%p377) target = $region52
        $region51: #{tpu_custom_call.1} parent=31 // pred_region
          %v380 = vld [vmem:[#allocation2] sm:$0xff]
          %381 = vst [vmem:[%s272] sm:$0xff] %v380
        $region52: #{tpu_custom_call.1} parent=31 // pred_fallthru
          _
        %s382 = sand.u32 %s123, 1
        %s383 = scalar_lea.sflag [#allocation5], %s382
        %s384 = sand.u32 %s123, 1
        %s385 = smul.addr %s384, 8
        %s386 = scalar_lea.vmem [#allocation9], %s385
        // Predicated region
        $region53: #{tpu_custom_call.1} parent=31 // pred_check
          %p387 = pneg %p133
        $region54: #{tpu_custom_call.1} parent=31 // pred_check_branch
          %389 = sbr.rel (%p387) target = $region56
        $region55: #{tpu_custom_call.1} parent=31 // pred_region
          %s391 = ssub.s32 128, 128
          %392 = vsyncadd %s383, %s391
          %s393 = smul.addr %s27, 128
          %s394 = scalar_lea.hbm %s3, %s393
          %s396 = sshll.u32 %s386, 4
          %s397 = int_to_ptr.vmem [resolvable:$true] %s396
          %399 = dma.vmem_to_hbm [thread:$0]  %s397, 128, %s394, %s383
        $region56: #{tpu_custom_call.1} parent=31 // pred_fallthru
          _
      $region32: #{tpu_custom_call.1} parent=5 // pred_fallthru
        _
      %p400 = scmp.le.s32.totalorder 2, %s18
      // Predicated region
      $region57: #{tpu_custom_call.1} parent=5 // pred_check
        %p401 = pneg %p400
      $region58: #{tpu_custom_call.1} parent=5 // pred_check_branch
        %403 = sbr.rel (%p401) target = $region60
      $region59: #{tpu_custom_call.1} parent=5 // pred_region
        %s404 = ssub.s32 %s18, 2
        // Predicated region
        $region61: #{tpu_custom_call.1} parent=59 // pred_check
          %p405 = pneg %p139
        $region62: #{tpu_custom_call.1} parent=59 // pred_check_branch
          %407 = sbr.rel (%p405) target = $region64
        $region63: #{tpu_custom_call.1} parent=59 // pred_region
          %s408 = sand.u32 %s124, 1
          %s409 = scalar_lea.sflag [#allocation5], %s408
          %s410 = sand.u32 %s124, 1
          %s411 = smul.addr %s410, 8
          %s412 = scalar_lea.vmem [#allocation9], %s411
          %413 = dma.done %s409, 128
        $region64: #{tpu_custom_call.1} parent=59 // pred_fallthru
          _
      $region60: #{tpu_custom_call.1} parent=5 // pred_fallthru
        _
    $region6: #{tpu_custom_call.1} parent=1 // loop_footer
      %s22 = sadd.s32 1, %s18
    $region7: #{tpu_custom_call.1} parent=1 // loop_footer_branch
      %17 = sbr.rel target = $region3
    $region8: #{tpu_custom_call.1} parent=1 // loop_exit
      _
    %414 = vsyncpa [#allocation4], 1
    %s415 = scalar_lea.sflag [#allocation4], 1
    %416 = vsyncpa %s415, 1
    %417 = vsyncpa [#allocation7], 1
    %s418 = scalar_lea.sflag [#allocation7], 1
    %419 = vsyncpa %s418, 1
    %420 = vsyncpa [#allocation5], 1
    %s421 = scalar_lea.sflag [#allocation5], 1
    %422 = vsyncpa %s421, 1

</llo_original>
